<compile_context>
chip_gen: v5e
topology: v5e:2x2
jax: 0.10.0
libtpu: 0.0.40
codegen_flags: <defaults>
</compile_context>

<pallas_src>
import functools
import math

import jax
import jax.numpy as jnp
from jax.experimental import pallas as pl
from jax.experimental.pallas import tpu as pltpu

_VMEM_LIMIT = 48 * 1024 * 1024  # above v5e/v6e scoped defaults, below v7x 64MiB


# ---------------------------------------------------------------------------
# Pallas kernels
# ---------------------------------------------------------------------------
def patch_embed_kernel(p_ref, w_ref, b_ref, o_ref):
    # bf16 patches [tm, C*p*p] @ bf16 W [C*p*p, D] (f32 accumulate) + b [1, D]
    o_ref[...] = (
        jnp.dot(p_ref[...], w_ref[...], preferred_element_type=jnp.float32)
        + b_ref[...]
    ).astype(o_ref.dtype)


def _layer_norm(v, g, b, eps=1e-6):
    # f32 statistics (v5e has no bf16 VPU/EUP path).
    mu = jnp.mean(v, axis=-1, keepdims=True)
    var = jnp.mean(jnp.square(v - mu), axis=-1, keepdims=True)
    return (v - mu) * jax.lax.rsqrt(var + eps) * g + b


def blocks_kernel(x0_ref, ln1_g_ref, ln1_b_ref, qkv_w_ref, qkv_b_ref,
                  proj_w_ref, proj_b_ref, ln2_g_ref, ln2_b_ref,
                  fc1_w_ref, fc1_b_ref, fc2_w_ref, fc2_b_ref,
                  o_ref, x_scr, attn_scr,
                  *, batch, seq, num_heads, head_dim):
    """All pre-norm ViT blocks, one block per grid step (depth grid).

    Residual stream x stays resident in VMEM scratch across the whole grid.
    """
    D = num_heads * head_dim
    M = batch * seq

    @pl.when(pl.program_id(0) == 0)
    def _init():
        # Load the (cls + patch + pos) tokens once; residual stream in f32.
        x_scr[...] = x0_ref[...].reshape(M, D).astype(jnp.float32)

    x = x_scr[...]                                            # [M, D] f32

    # ----- Attention branch: x += Proj(MHSA(LN1(x))) -----
    xn = _layer_norm(x, ln1_g_ref[0], ln1_b_ref[0])
    qkv = jnp.dot(xn.astype(jnp.bfloat16), qkv_w_ref[0],
                  preferred_element_type=jnp.float32) + qkv_b_ref[0]  # [M, 3D]

    # Per-head scores/softmax/PV (static loop, small batched dots); the head
    # outputs are packed into one [M, D] slab so the output projection below
    # is a single D-wide MXU matmul instead of H K-underfilled ones.
    for h in range(num_heads):
        qs = slice(h * head_dim, (h + 1) * head_dim)
        ks = slice(D + h * head_dim, D + (h + 1) * head_dim)
        vs = slice(2 * D + h * head_dim, 2 * D + (h + 1) * head_dim)
        # 1/sqrt(head_dim) is already folded into the Q columns of qkv_w.
        qh = qkv[:, qs].astype(jnp.bfloat16).reshape(batch, seq, head_dim)
        kh = qkv[:, ks].astype(jnp.bfloat16).reshape(batch, seq, head_dim)
        vh = qkv[:, vs].astype(jnp.bfloat16).reshape(batch, seq, head_dim)
        s = jnp.einsum('bqd,bkd->bqk', qh, kh,
                       preferred_element_type=jnp.float32)
        s = s - jnp.max(s, axis=-1, keepdims=True)
        p = jnp.exp(s)
        p = p * pl.reciprocal(jnp.sum(p, axis=-1, keepdims=True), approx=True)
        oh = jnp.einsum('bqk,bkd->bqd', p.astype(jnp.bfloat16), vh,
                        preferred_element_type=jnp.float32)   # [B, S, hd]
        attn_scr[:, h * head_dim:(h + 1) * head_dim] = oh.reshape(M, head_dim)

    attn = attn_scr[...].astype(jnp.bfloat16)                 # [M, D]
    x = x + jnp.dot(attn, proj_w_ref[0],
                    preferred_element_type=jnp.float32) + proj_b_ref[0]

    # ----- MLP branch: x += FC2(GELU(FC1(LN2(x)))) -----
    xn2 = _layer_norm(x, ln2_g_ref[0], ln2_b_ref[0])
    h1 = jnp.dot(xn2.astype(jnp.bfloat16), fc1_w_ref[0],
                 preferred_element_type=jnp.float32) + fc1_b_ref[0]
    h1 = jax.nn.gelu(h1, approximate=False)                   # exact GELU
    x = x + jnp.dot(h1.astype(jnp.bfloat16), fc2_w_ref[0],
                    preferred_element_type=jnp.float32) + fc2_b_ref[0]

    x_scr[...] = x
    # Output block index is clamped to 0 until i == stop_block, so only the
    # last `num_blocks` block outputs survive in HBM.
    o_ref[...] = x.reshape(1, batch, seq, D).astype(o_ref.dtype)


# ---------------------------------------------------------------------------
# Wrappers
# ---------------------------------------------------------------------------
def _pick_tile(m):
    for t in (256, 128, 64, 32, 16, 8):
        if m % t == 0:
            return t
    return m


def patch_embed(x, w_bf16, b, patch):
    """NCHW input -> [B, N, D] patch tokens (Conv2d with kernel=stride=patch)."""
    B, C, H, W = x.shape
    gh, gw = H // patch, W // patch
    # Same order as Conv2d + flatten(2).transpose(1,2): row-major (gh, gw)
    # grid, each patch flattened as (C, p, p).  (Host-side layout plumbing.)
    p = x.reshape(B, C, gh, patch, gw, patch)
    p = jnp.transpose(p, (0, 2, 4, 1, 3, 5)).reshape(B * gh * gw,
                                                     C * patch * patch)
    p = p.astype(jnp.bfloat16)
    M, K = p.shape
    D = w_bf16.shape[1]
    tm = _pick_tile(M)
    out = pl.pallas_call(
        patch_embed_kernel,
        out_shape=jax.ShapeDtypeStruct((M, D), jnp.float32),
        grid_spec=pltpu.PrefetchScalarGridSpec(
            num_scalar_prefetch=0,
            grid=(M // tm,),
            in_specs=[pl.BlockSpec((tm, K), lambda i: (i, 0)),
                      pl.BlockSpec((K, D), lambda i: (0, 0)),
                      pl.BlockSpec((1, D), lambda i: (0, 0))],
            out_specs=pl.BlockSpec((tm, D), lambda i: (i, 0)),
        ),
        compiler_params=pltpu.CompilerParams(
            dimension_semantics=("parallel",),
            vmem_limit_bytes=_VMEM_LIMIT),
    )(p, w_bf16, b)
    return out.reshape(B, gh * gw, D)


def run_blocks(x_tokens, blocks, num_heads, head_dim, num_blocks):
    """Run all fused transformer blocks; return last `num_blocks` outputs."""
    depth = blocks['qkv_w'].shape[0]
    assert 1 <= num_blocks <= depth
    stop_block = depth - num_blocks
    B, S, D = x_tokens.shape
    HID = blocks['fc1_w'].shape[-1]
    M = B * S

    def wspec(a, b):  # stacked per-block weight: block (1, a, b), index by depth
        return pl.BlockSpec((1, a, b), lambda i: (i, 0, 0))

    def out_index_map(i):
        return (jnp.maximum(i - stop_block, 0), 0, 0, 0)

    kernel = functools.partial(blocks_kernel, batch=B, seq=S,
                               num_heads=num_heads, head_dim=head_dim)

    grid_spec = pltpu.PrefetchScalarGridSpec(
        num_scalar_prefetch=0,
        grid=(depth,),
        in_specs=[
            pl.BlockSpec((B, S, D), lambda i: (0, 0, 0)),   # tokens (resident)
            wspec(1, D), wspec(1, D),                       # ln1 gamma/beta
            wspec(D, 3 * D), wspec(1, 3 * D),               # qkv w/b
            wspec(D, D), wspec(1, D),                       # proj w/b
            wspec(1, D), wspec(1, D),                       # ln2 gamma/beta
            wspec(D, HID), wspec(1, HID),                   # fc1 w/b
            wspec(HID, D), wspec(1, D),                     # fc2 w/b
        ],
        out_specs=pl.BlockSpec((1, B, S, D), out_index_map),
        scratch_shapes=[pltpu.VMEM((M, D), jnp.float32),    # residual stream
                        pltpu.VMEM((M, D), jnp.float32)],   # attention heads
    )
    out = pl.pallas_call(
        kernel,
        out_shape=jax.ShapeDtypeStruct((num_blocks, B, S, D), jnp.float32),
        grid_spec=grid_spec,
        compiler_params=pltpu.CompilerParams(
            # depth axis is a sequential dependency (residual stream scratch).
            dimension_semantics=("arbitrary",),
            vmem_limit_bytes=_VMEM_LIMIT),
    )(x_tokens, blocks['ln1_g'], blocks['ln1_b'],
      blocks['qkv_w'], blocks['qkv_b'], blocks['proj_w'], blocks['proj_b'],
      blocks['ln2_g'], blocks['ln2_b'], blocks['fc1_w'], blocks['fc1_b'],
      blocks['fc2_w'], blocks['fc2_b'])
    return [out[j] for j in range(num_blocks)]


def mae_forward(x, params, num_blocks):
    """Returns list of the outputs of the last `num_blocks` transformer blocks."""
    B = x.shape[0]
    tokens = patch_embed(x, params['patch_w'], params['patch_b'],
                         params['patch'])                       # [B, N, D]
    cls = jnp.broadcast_to(params['cls_token'], (B, 1, tokens.shape[-1]))
    xt = jnp.concatenate([cls, tokens], axis=1) + params['pos_embed']
    # pos_drop is identity (eval / p=0)
    return run_blocks(xt, params['blocks'], params['num_heads'],
                      params['head_dim'], num_blocks)


# ---------------------------------------------------------------------------
# Deterministic parameter construction (synthetic, small ViT)
# ---------------------------------------------------------------------------
def init_params(key, *, in_chans, img_size, patch, embed_dim, num_heads,
                depth, mlp_ratio=4):
    n_patches = (img_size // patch) ** 2
    seq_len = n_patches + 1
    hidden = embed_dim * mlp_ratio
    head_dim = embed_dim // num_heads
    scale = 1.0 / math.sqrt(head_dim)
    keys = jax.random.split(key, 7)

    def w(k, shape, s=0.02):
        return (s * jax.random.normal(k, shape)).astype(jnp.float32)

    qkv_w = w(keys[3], (depth, embed_dim, 3 * embed_dim))
    # Fold the 1/sqrt(head_dim) attention scale into the Q columns (the qkv
    # bias is zero here, otherwise it would be scaled identically).
    qkv_w = qkv_w.at[:, :, :embed_dim].multiply(scale)

    params = {
        'patch': patch,
        'num_heads': num_heads,
        'head_dim': head_dim,
        # MXU operands in bf16; biases / LN / embeddings stay f32.
        'patch_w': w(keys[0], (in_chans * patch * patch,
                               embed_dim)).astype(jnp.bfloat16),
        'patch_b': jnp.zeros((1, embed_dim), jnp.float32),
        'cls_token': w(keys[1], (1, 1, embed_dim)),
        'pos_embed': w(keys[2], (1, seq_len, embed_dim)),
        'blocks': {
            'ln1_g': jnp.ones((depth, 1, embed_dim), jnp.float32),
            'ln1_b': jnp.zeros((depth, 1, embed_dim), jnp.float32),
            'qkv_w': qkv_w.astype(jnp.bfloat16),
            'qkv_b': jnp.zeros((depth, 1, 3 * embed_dim), jnp.float32),
            'proj_w': w(keys[4], (depth, embed_dim,
                                  embed_dim)).astype(jnp.bfloat16),
            'proj_b': jnp.zeros((depth, 1, embed_dim), jnp.float32),
            'ln2_g': jnp.ones((depth, 1, embed_dim), jnp.float32),
            'ln2_b': jnp.zeros((depth, 1, embed_dim), jnp.float32),
            'fc1_w': w(keys[5], (depth, embed_dim, hidden)).astype(jnp.bfloat16),
            'fc1_b': jnp.zeros((depth, 1, hidden), jnp.float32),
            'fc2_w': w(keys[6], (depth, hidden, embed_dim)).astype(jnp.bfloat16),
            'fc2_b': jnp.zeros((depth, 1, embed_dim), jnp.float32),
        },
    }
    return params


# ---------------------------------------------------------------------------
if __name__ == "__main__":
    # Small synthetic config consistent with the MAE/ViT forward:
    #   B=2, C=4, 16x16 image, patch 8 -> 4 patches (+cls = 5 tokens),
    #   embed_dim=32, 4 heads, depth=4, num_blocks=2 (return last 2 blocks).
    B, C, HW = 2, 4, 16
    PATCH, DIM, HEADS, DEPTH, NUM_BLOCKS = 8, 32, 4, 4, 2

    key = jax.random.PRNGKey(0)
    kx, kp = jax.random.split(key)
    x = jax.random.normal(kx, (B, C, HW, HW), dtype=jnp.float32)
    params = init_params(kp, in_chans=C, img_size=HW, patch=PATCH,
                         embed_dim=DIM, num_heads=HEADS, depth=DEPTH)

    outs = mae_forward(x, params, NUM_BLOCKS)
    outs = [jax.block_until_ready(o) for o in outs]

    seq_len = (HW // PATCH) ** 2 + 1
    assert len(outs) == NUM_BLOCKS
    assert all(o.shape == (B, seq_len, DIM) for o in outs)
    assert all(bool(jnp.all(jnp.isfinite(o))) for o in outs)
    print("KERNEL_OK")
</pallas_src>

<mosaic_0001>
module attributes {stable_mosaic.version = 11 : i64} {
  func.func @patch_embed_kernel(%arg0: i32, %arg1: memref<8x256xbf16, #tpu.memory_space<vmem>>, %arg2: memref<256x32xbf16, #tpu.memory_space<vmem>>, %arg3: memref<1x32xf32, #tpu.memory_space<vmem>>, %arg4: memref<8x32xf32, #tpu.memory_space<vmem>>) attributes {dimension_semantics = [#tpu.dimension_semantics<parallel>], iteration_bounds = array<i64: 1>, scalar_prefetch = 0 : i64, scratch_operands = 0 : i64, tpu.core_type = #tpu.core_type<tc>, window_params = [{transform_indices = @transform_0, window_bounds = array<i64: 8, 256>}, {pipeline_mode = #tpu.pipeline_mode<synchronous>, transform_indices = @transform_1, window_bounds = array<i64: 256, 32>}, {pipeline_mode = #tpu.pipeline_mode<synchronous>, transform_indices = @transform_2, window_bounds = array<i64: 1, 32>}, {transform_indices = @transform_3, window_bounds = array<i64: 8, 32>}]} {
    %c0 = arith.constant 0 : index
    %c0_0 = arith.constant 0 : index
    %0 = vector.load %arg1[%c0, %c0_0] : memref<8x256xbf16, #tpu.memory_space<vmem>>, vector<8x256xbf16>
    %c0_1 = arith.constant 0 : index
    %c0_2 = arith.constant 0 : index
    %1 = vector.load %arg2[%c0_1, %c0_2] : memref<256x32xbf16, #tpu.memory_space<vmem>>, vector<256x32xbf16>
    %cst = arith.constant dense<0.000000e+00> : vector<8x32xf32>
    %2 = tpu.matmul %0, %1, %cst {dimension_numbers = #tpu.dot_dimension_numbers<[1], [0], [0], [1], [0, 0, 1, 1], [], []>} : vector<8x256xbf16>, vector<256x32xbf16>, vector<8x32xf32> -> vector<8x32xf32>
    %c0_3 = arith.constant 0 : index
    %c0_4 = arith.constant 0 : index
    %3 = vector.load %arg3[%c0_3, %c0_4] : memref<1x32xf32, #tpu.memory_space<vmem>>, vector<1x32xf32>
    %4 = vector.broadcast %3 : vector<1x32xf32> to vector<8x32xf32>
    %5 = arith.addf %2, %4 : vector<8x32xf32>
    %c0_5 = arith.constant 0 : index
    %c0_6 = arith.constant 0 : index
    %6 = vector.load %arg4[%c0_5, %c0_6] : memref<8x32xf32, #tpu.memory_space<vmem>>, vector<8x32xf32>
    tpu.vector_store %arg4[%c0_5, %c0_6], %5 {strides = array<i32>} : memref<8x32xf32, #tpu.memory_space<vmem>>, vector<8x32xf32>,
    return
  }
  func.func @transform_0(%arg0: i32) -> (i32, i32) {
    %c0_i32 = arith.constant 0 : i32
    %c0_i32_0 = arith.constant 0 : i32
    return %arg0, %c0_i32 : i32, i32
  }
  func.func @transform_1(%arg0: i32) -> (i32, i32) {
    %c0_i32 = arith.constant 0 : i32
    %c0_i32_0 = arith.constant 0 : i32
    %c0_i32_1 = arith.constant 0 : i32
    return %c0_i32, %c0_i32_0 : i32, i32
  }
  func.func @transform_2(%arg0: i32) -> (i32, i32) {
    %c0_i32 = arith.constant 0 : i32
    %c0_i32_0 = arith.constant 0 : i32
    %c0_i32_1 = arith.constant 0 : i32
    return %c0_i32, %c0_i32_0 : i32, i32
  }
  func.func @transform_3(%arg0: i32) -> (i32, i32) {
    %c0_i32 = arith.constant 0 : i32
    %c0_i32_0 = arith.constant 0 : i32
    return %arg0, %c0_i32 : i32, i32
  }
}

</mosaic_0001>

<llo_original>
// kernel: tpu_custom_call.1
$region0: #{tpu_custom_call.1}
  #allocation0 [shape = 'u32[]', space=smem, size = 0x4, offset = 0x4, fixed_abs, tag = 'smem constant byte address 0x4 - core index']
  #allocation1 [shape = 'u32[72,128]{1,0:T(1,128)}', space=vmem, size = 0x9000, scoped, tag = 'internal scratch']
  %s0 = inlined_call_operand.vmem [shape: bf16[8,256], index: 0, kind: input, shape index: {}]
  %s1 = inlined_call_operand.vmem [shape: bf16[256,32], index: 1, kind: input, shape index: {}]
  %s2 = inlined_call_operand.vmem [shape: f32[1,32], index: 2, kind: input, shape index: {}]
  %s3 = inlined_call_operand.hbm [shape: f32[8,32], index: 3, kind: output, shape index: {}]
  %s4 = sld [smem:[#allocation0]]
  $region22: #{tpu_custom_call.1} parent=0
    _
  %s6 = ssub.s32 1, %s4
  %s7 = scalar_select 0, %s6, %s4
  $region1: #{tpu_custom_call.1} parent=0
    #allocation2 [shape = 'u8[4096]{0}', space=vmem, size = 0x1000, scoped, tag = 'output window, operand 0, single buffered']
    #allocation3 [shape = 's32[1]{0}', space=sflag, size = 0x4, scoped, tag = 'scoped memory for tpu_custom_call.1']
    %8 = vsyncpa [#allocation3], 0
    // Predicated region
    $region2: #{tpu_custom_call.1} parent=1 // pred_check
      _
    $region3: #{tpu_custom_call.1} parent=1 // pred_check_branch
      %10 = sbr.rel (0) target = $region5
    $region4: #{tpu_custom_call.1} parent=1 // pred_region
      _
    $region5: #{tpu_custom_call.1} parent=1 // pred_fallthru
      _
    // Predicated region
    $region6: #{tpu_custom_call.1} parent=1 // pred_check
      _
    $region7: #{tpu_custom_call.1} parent=1 // pred_check_branch
      %12 = sbr.rel (0) target = $region9
    $region8: #{tpu_custom_call.1} parent=1 // pred_region
      _
    $region9: #{tpu_custom_call.1} parent=1 // pred_fallthru
      _
    // Predicated region
    $region10: #{tpu_custom_call.1} parent=1 // pred_check
      _
    $region11: #{tpu_custom_call.1} parent=1 // pred_check_branch
      %14 = sbr.rel (0) target = $region13
    $region12: #{tpu_custom_call.1} parent=1 // pred_region
      _
    $region13: #{tpu_custom_call.1} parent=1 // pred_fallthru
      _
    %v15 = vld [vmem:[%s0] sm:$0xff]
    %v16 = vld [vmem:[%s1] sm:$0xf]
    %v17 = vld [vmem:[%s1 + $0x4] sm:$0xf]
    %v18 = vld [vmem:[%s1 + $0x8] sm:$0xf]
    %v19 = vld [vmem:[%s1 + $0xc] sm:$0xf]
    %v20 = vld [vmem:[%s1 + $0x10] sm:$0xf]
    %v21 = vld [vmem:[%s1 + $0x14] sm:$0xf]
    %v22 = vld [vmem:[%s1 + $0x18] sm:$0xf]
    %v23 = vld [vmem:[%s1 + $0x1c] sm:$0xf]
    %v24 = vld [vmem:[%s1 + $0x20] sm:$0xf]
    %v25 = vld [vmem:[%s1 + $0x24] sm:$0xf]
    %v26 = vld [vmem:[%s1 + $0x28] sm:$0xf]
    %v27 = vld [vmem:[%s1 + $0x2c] sm:$0xf]
    %v28 = vld [vmem:[%s1 + $0x30] sm:$0xf]
    %v29 = vld [vmem:[%s1 + $0x34] sm:$0xf]
    %v30 = vld [vmem:[%s1 + $0x38] sm:$0xf]
    %v31 = vld [vmem:[%s1 + $0x3c] sm:$0xf]
    %v32 = vld [vmem:[%s1 + $0x40] sm:$0xf]
    %v33 = vld [vmem:[%s1 + $0x44] sm:$0xf]
    %v34 = vld [vmem:[%s1 + $0x48] sm:$0xf]
    %v35 = vld [vmem:[%s1 + $0x4c] sm:$0xf]
    %v36 = vld [vmem:[%s1 + $0x50] sm:$0xf]
    %v37 = vld [vmem:[%s1 + $0x54] sm:$0xf]
    %v38 = vld [vmem:[%s1 + $0x58] sm:$0xf]
    %v39 = vld [vmem:[%s1 + $0x5c] sm:$0xf]
    %v40 = vld [vmem:[%s1 + $0x60] sm:$0xf]
    %v41 = vld [vmem:[%s1 + $0x64] sm:$0xf]
    %v42 = vld [vmem:[%s1 + $0x68] sm:$0xf]
    %v43 = vld [vmem:[%s1 + $0x6c] sm:$0xf]
    %v44 = vld [vmem:[%s1 + $0x70] sm:$0xf]
    %v45 = vld [vmem:[%s1 + $0x74] sm:$0xf]
    %v46 = vld [vmem:[%s1 + $0x78] sm:$0xf]
    %v47 = vld [vmem:[%s1 + $0x7c] sm:$0xf]
    %v48 = vld [vmem:[%s2] sm:$0x1]
    %v50 = vperm.slane %v48, 0
    %v53 = vunpack.c.l.b16 %v15
    %v54 = vunpack.c.h.b16 %v15
    %v55 = vpack.c.b16 %v53, %v53
    %v56 = vpack.c.b16 %v54, %v54
    %v91 = vunpack.c.l.b16 %v16
    %v92 = vunpack.c.l.b16 %v17
    %v93 = vunpack.c.l.b16 %v18
    %v94 = vunpack.c.l.b16 %v19
    %v95 = vunpack.c.l.b16 %v20
    %v96 = vunpack.c.l.b16 %v21
    %v97 = vunpack.c.l.b16 %v22
    %v98 = vunpack.c.l.b16 %v23
    %v99 = vunpack.c.l.b16 %v24
    %v100 = vunpack.c.l.b16 %v25
    %v101 = vunpack.c.l.b16 %v26
    %v102 = vunpack.c.l.b16 %v27
    %v103 = vunpack.c.l.b16 %v28
    %v104 = vunpack.c.l.b16 %v29
    %v105 = vunpack.c.l.b16 %v30
    %v106 = vunpack.c.l.b16 %v31
    %v107 = vunpack.c.l.b16 %v32
    %v108 = vunpack.c.l.b16 %v33
    %v109 = vunpack.c.l.b16 %v34
    %v110 = vunpack.c.l.b16 %v35
    %v111 = vunpack.c.l.b16 %v36
    %v112 = vunpack.c.l.b16 %v37
    %v113 = vunpack.c.l.b16 %v38
    %v114 = vunpack.c.l.b16 %v39
    %v115 = vunpack.c.l.b16 %v40
    %v116 = vunpack.c.l.b16 %v41
    %v117 = vunpack.c.l.b16 %v42
    %v118 = vunpack.c.l.b16 %v43
    %v119 = vunpack.c.l.b16 %v44
    %v120 = vunpack.c.l.b16 %v45
    %v121 = vunpack.c.l.b16 %v46
    %v122 = vunpack.c.l.b16 %v47
    %v123 = vpack.c.b16 %v92, %v91
    %v124 = vpack.c.b16 %v94, %v93
    %v125 = vpack.c.b16 %v96, %v95
    %v126 = vpack.c.b16 %v98, %v97
    %v127 = vpack.c.b16 %v100, %v99
    %v128 = vpack.c.b16 %v102, %v101
    %v129 = vpack.c.b16 %v104, %v103
    %v130 = vpack.c.b16 %v106, %v105
    %v131 = vpack.c.b16 %v108, %v107
    %v132 = vpack.c.b16 %v110, %v109
    %v133 = vpack.c.b16 %v112, %v111
    %v134 = vpack.c.b16 %v114, %v113
    %v135 = vpack.c.b16 %v116, %v115
    %v136 = vpack.c.b16 %v118, %v117
    %v137 = vpack.c.b16 %v120, %v119
    %v138 = vpack.c.b16 %v122, %v121
    %155 = vmatpush.bf16.msra.mxu0 %v130
    %156 = vmatpush.bf16.msra.mxu0 %v129
    %157 = vmatpush.bf16.msra.mxu0 %v128
    %158 = vmatpush.bf16.msra.mxu0 %v127
    %159 = vmatpush.bf16.msra.mxu0 %v126
    %160 = vmatpush.bf16.msra.mxu0 %v125
    %161 = vmatpush.bf16.msra.mxu0 %v124
    %162 = vmatpush.bf16.msra.mxu0 %v123
    %163 = vmatmul.bf16.gmra.mxu0 %v55
    %v164 = vpop.f32.mrf.mxu0
    %v165 = vadd.f32 %v50, %v164
    %v166 = vpop.f32.mrf.mxu0
    %167 = vdwg.mxu0
    %168 = vmatpush.bf16.msra.mxu0 %v138
    %169 = vmatpush.bf16.msra.mxu0 %v137
    %170 = vmatpush.bf16.msra.mxu0 %v136
    %171 = vmatpush.bf16.msra.mxu0 %v135
    %172 = vmatpush.bf16.msra.mxu0 %v134
    %173 = vmatpush.bf16.msra.mxu0 %v133
    %174 = vmatpush.bf16.msra.mxu0 %v132
    %175 = vmatpush.bf16.msra.mxu0 %v131
    %176 = vmatmul.bf16.gmra.mxu0 %v56
    %v177 = vpop.f32.mrf.mxu0
    %v178 = vadd.f32 %v165, %v177
    %v179 = vpop.f32.mrf.mxu0
    %180 = vdwg.mxu0
    %vm181 = vcmask 261120
    %182 = vst.msk [vmem:[#allocation2] sm:$0xff] %vm181, %v178
    // Predicated region
    $region14: #{tpu_custom_call.1} parent=1 // pred_check
      _
    $region15: #{tpu_custom_call.1} parent=1 // pred_check_branch
      %184 = sbr.rel (0) target = $region17
    $region16: #{tpu_custom_call.1} parent=1 // pred_region
      %186 = vsyncadd [#allocation3], 0
      %s188 = sshll.u32 [#allocation2], 4
      %s189 = int_to_ptr.vmem [resolvable:$true] %s188
      %s190 = sshll.u32 %s3, 4
      %s191 = int_to_ptr.hbm [resolvable:$true] %s190
      %193 = dma.vmem_to_hbm [thread:$0]  %s189, 128, %s191, [#allocation3]
    $region17: #{tpu_custom_call.1} parent=1 // pred_fallthru
      _
    // Predicated region
    $region18: #{tpu_custom_call.1} parent=1 // pred_check
      _
    $region19: #{tpu_custom_call.1} parent=1 // pred_check_branch
      %195 = sbr.rel (0) target = $region21
    $region20: #{tpu_custom_call.1} parent=1 // pred_region
      %197 = dma.done [#allocation3], 128
    $region21: #{tpu_custom_call.1} parent=1 // pred_fallthru
      _
    %198 = vsyncpa [#allocation3], 1

</llo_original>
